<compile_context>
chip_gen: v7x
topology: tpu7x:2x2x1
jax: 0.10.0
libtpu: 0.0.40
codegen_flags: <defaults>
</compile_context>

<pallas_src>
import jax
import jax.numpy as jnp
from jax.experimental import pallas as pl
from jax.experimental.pallas import tpu as pltpu


# ----------------------------- Pallas kernels --------------------------------

def _tan_fused_kernel(x_ref, w1_ref, b1_ref, pool_ref, wh_ref, bh_ref,
                      wv_ref, bv_ref, mask_ref, heads_ref, vid_ref):
    # Per-tube block (grid=(B,)):
    #   x:    (P, C)  raw tube features (f32)
    #   w1:   (H, C)  conv1d k=1 weight (bf16)      b1: (H, 1) f32
    #   pool: (P, TT) avg_pool1d o span-average composed pooling matrix (bf16)
    #   wh:   (2J, H) stacked [contrastive; iou] 1x1-conv heads (bf16)  bh: (2J,1) f32
    #   wv:   (J, H)  vid_avg -> joint-space projection (bf16)          bv: (1, J) f32
    #   mask: (1, TT) flattened upper-triangular proposal mask (f32)
    # Outputs:
    #   heads_ref: (2J, TT) bf16  per-proposal L2-normalized [vc_n; vi_n]
    #   vid_ref:   (1, J)   f32   lane-dense vid_avg_feats row
    bf16, f32 = jnp.bfloat16, jnp.float32
    eps2 = 1e-24  # (F.normalize eps)^2

    x = x_ref[...].astype(bf16)                                        # (P, C)

    # conv1d(k=1) over channels + ReLU -> y: (H, P)
    # TODO(synk): at production C (>=256) keep this on the MXU with K aligned to
    # 128/256; at this toy C=8 it underfills one MXU pass but stays correct.
    y = jax.lax.dot_general(w1_ref[...], x,
                            dimension_numbers=(((1,), (1,)), ((), ())),
                            preferred_element_type=f32) + b1_ref[...]
    y = jnp.maximum(y, 0.0).astype(bf16)                               # (H, P)

    # avg_pool1d (P->T) composed with 2D span-average (T->T*T): (H, TT)
    map_h = jnp.dot(y, pool_ref[...], preferred_element_type=f32).astype(bf16)

    # stacked 1x1-conv heads [contrastive; iou], masked
    heads = jnp.dot(wh_ref[...], map_h, preferred_element_type=f32) + bh_ref[...]
    heads = heads * mask_ref[...]                                      # (2J, TT) f32

    # per-proposal L2 normalization over the joint axis (F.normalize(dim=0));
    # rsqrt lands on the EUP slot (no divide chain on the VALU)
    J = wv_ref.shape[0]
    vc = heads[:J]
    vi = heads[J:]
    vc_n = vc * jax.lax.rsqrt(jnp.maximum(jnp.sum(vc * vc, axis=0, keepdims=True), eps2))
    vi_n = vi * jax.lax.rsqrt(jnp.maximum(jnp.sum(vi * vi, axis=0, keepdims=True), eps2))
    heads_ref[...] = jnp.concatenate([vc_n, vi_n], axis=0).astype(bf16)

    # vid_avg_feats: temporal mean -> joint space, emitted lane-dense as (1, J)
    # (MXU matvec avoids any transpose / 1D relayout)
    P = x_ref.shape[0]
    avg_row = jnp.full((1, P), 1.0 / P, dtype=bf16)
    vid_h = jax.lax.dot_general(avg_row, y,
                                dimension_numbers=(((1,), (1,)), ((), ())),
                                preferred_element_type=f32).astype(bf16)   # (1, H)
    vid_ref[...] = jax.lax.dot_general(vid_h, wv_ref[...],
                                       dimension_numbers=(((1,), (1,)), ((), ())),
                                       preferred_element_type=f32) + bv_ref[...]


def _tan_score_kernel(heads_ref, sent_ref, mask_ref, out_ref):
    # Per-tube block (grid=(B,)):
    #   heads: (2J, TT) bf16  L2-normalized [vc_n; vi_n]
    #   sent:  (2, 2J)  bf16  [[sfc_n, 0], [0, sfi_n]] compact per-tube sentence block
    #   mask:  (1, TT)  f32
    # Output: (2, TT) f32  row 0 = contrastive score, row 1 = iou score
    s = jnp.dot(sent_ref[...], heads_ref[...],
                preferred_element_type=jnp.float32)                    # (2, TT) on the MXU
    mask = mask_ref[...]
    row = jax.lax.broadcasted_iota(jnp.int32, s.shape, 0)
    # row 0: contrastive score * mask ; row 1: sigmoid(10 * iou_score) * mask
    out_ref[...] = jnp.where(row == 0, s, jax.nn.sigmoid(s * 10.0)) * mask


# ------------------------------ wrappers --------------------------------------

_VMEM_LIMIT = 32 * 1024 * 1024   # fits v5e/v6e/v7x scoped VMEM budgets


def tan_fused_call(feats, w1_bf, b1, pool_bf, wh_bf, bh, wv_bf, bv_row, mask_row):
    B, P, C = feats.shape
    H = w1_bf.shape[0]
    J2 = wh_bf.shape[0]
    J = wv_bf.shape[0]
    TT = pool_bf.shape[1]
    const2 = lambda b: (0, 0)          # weights / pooling matrix stay VMEM-resident
    return pl.pallas_call(
        _tan_fused_kernel,
        out_shape=(jax.ShapeDtypeStruct((B, J2, TT), jnp.bfloat16),
                   jax.ShapeDtypeStruct((B, 1, J), jnp.float32)),
        grid=(B,),
        in_specs=[
            pl.BlockSpec((None, P, C), lambda b: (b, 0, 0)),   # per-tube features
            pl.BlockSpec((H, C), const2),
            pl.BlockSpec((H, 1), const2),
            pl.BlockSpec((P, TT), const2),
            pl.BlockSpec((J2, H), const2),
            pl.BlockSpec((J2, 1), const2),
            pl.BlockSpec((J, H), const2),
            pl.BlockSpec((1, J), const2),
            pl.BlockSpec((1, TT), const2),
        ],
        out_specs=(pl.BlockSpec((None, J2, TT), lambda b: (b, 0, 0)),
                   pl.BlockSpec((None, 1, J), lambda b: (b, 0, 0))),
        compiler_params=pltpu.CompilerParams(
            dimension_semantics=("parallel",),          # shards tubes across TCs on v7x
            vmem_limit_bytes=_VMEM_LIMIT),
    )(feats, w1_bf, b1, pool_bf, wh_bf, bh, wv_bf, bv_row, mask_row)


def tan_scores_call(heads_n, sent_block, mask_row):
    B, J2, TT = heads_n.shape
    return pl.pallas_call(
        _tan_score_kernel,
        out_shape=jax.ShapeDtypeStruct((B, 2, TT), jnp.float32),
        grid=(B,),
        in_specs=[
            pl.BlockSpec((None, J2, TT), lambda b: (b, 0, 0)),
            pl.BlockSpec((None, 2, J2), lambda b: (b, 0, 0)),
            pl.BlockSpec((1, TT), lambda b: (0, 0)),
        ],
        out_specs=pl.BlockSpec((None, 2, TT), lambda b: (b, 0, 0)),
        compiler_params=pltpu.CompilerParams(
            dimension_semantics=("parallel",),
            vmem_limit_bytes=_VMEM_LIMIT),
    )(heads_n, sent_block, mask_row)


# ------------------------------ plain-JAX glue ---------------------------------

def build_pool_and_mask(T):
    t = jnp.arange(T)
    tt = t[:, None, None]          # clip index
    ii = t[None, :, None]          # proposal start
    jj = t[None, None, :]          # proposal end
    valid = (jj >= ii)
    inside = (tt >= ii) & (tt <= jj) & valid
    length = jnp.maximum(jj - ii + 1, 1).astype(jnp.float32)
    pool_mat = (inside.astype(jnp.float32) / length).reshape(T, T * T)  # (T, T*T)
    mask2d = valid[0].astype(jnp.float32)                               # (T, T) upper-triangular
    return pool_mat, mask2d


def build_pool1d(P, T):
    # vectorized avg_pool1d matrix (assumes P % T == 0, as in the reference featpool)
    s = P // T
    p = jnp.arange(P)
    t = jnp.arange(T)
    return ((p[:, None] // s) == t[None, :]).astype(jnp.float32) / s     # (P, T)


def text_encoder(queries, wordlens, vid_avg_feats, params):
    # TODO(synk): real text encoder is a pretrained transformer (cfg.MODEL.TAN.TEXT_ENCODER.NAME)
    # conditioned on vid_avg_feats; here: embedding + masked mean + two linear heads -> (1, J) per video.
    emb = params["emb"][queries]                                        # (V, W, E)
    wmask = (jnp.arange(queries.shape[1])[None, :] < wordlens[:, None]).astype(jnp.float32)
    qmean = (emb * wmask[:, :, None]).sum(1) / jnp.maximum(wmask.sum(1, keepdims=True), 1.0)
    sent = qmean @ params["ws"].T + params["bs"]
    sent_iou = qmean @ params["wsi"].T + params["bsi"]
    sent_feat = [sent[i:i + 1] for i in range(sent.shape[0])]
    sent_feat_iou = [sent_iou[i:i + 1] for i in range(sent_iou.shape[0])]
    return sent_feat, sent_feat_iou


def tan_forward(params, feats_in, queries, wordlens, num_tubes, T):
    """Inference (eval-mode) forward of TAN: returns (contrastive_scores, iou_scores)."""
    B, P, C = feats_in.shape
    J = params["wc"].shape[0]
    TT = T * T

    # ---- trace-time constants (shared per-tube pooling matrix; no kron) ----
    pool1d = build_pool1d(P, T)                                  # (P, T)
    pool_mat, mask2d = build_pool_and_mask(T)                    # (T, TT), (T, T)
    combined = pool1d @ pool_mat                                 # (P, TT) avg_pool1d o span-average
    mask_row = mask2d.reshape(1, TT)                             # (1, TT)

    # ---- static operands pre-cast to bf16 (f32 biases / accumulation kept) ----
    w1_bf = params["w1"].astype(jnp.bfloat16)
    pool_bf = combined.astype(jnp.bfloat16)
    wh_bf = jnp.concatenate([params["wc"], params["wi"]], axis=0).astype(jnp.bfloat16)  # (2J, H)
    bh = jnp.concatenate([params["bc"], params["bi"]], axis=0)                          # (2J, 1)
    wv_bf = params["wv"].astype(jnp.bfloat16)
    bv_row = params["bv"].reshape(1, J)

    # ---- fused featpool + feat2d + proposal_conv + per-proposal L2 norm (grid over tubes) ----
    heads_n, vid = tan_fused_call(feats_in, w1_bf, params["b1"], pool_bf,
                                  wh_bf, bh, wv_bf, bv_row, mask_row)
    vid_avg_feats = vid.reshape(B, J)                            # lane-dense, no transpose

    # ---- text encoder (plain-JAX glue) ----
    sent_feat, sent_feat_iou = text_encoder(queries, wordlens, vid_avg_feats, params)

    # ---- compact per-tube sentence block (no TT-times repeat) ----
    eps = 1e-12
    sfc = jnp.concatenate(sent_feat, axis=0)                     # (V, J)
    sfi = jnp.concatenate(sent_feat_iou, axis=0)                 # (V, J)
    sfc_n = sfc / jnp.maximum(jnp.linalg.norm(sfc, axis=1, keepdims=True), eps)
    sfi_n = sfi / jnp.maximum(jnp.linalg.norm(sfi, axis=1, keepdims=True), eps)
    tube2vid = jnp.asarray([i for i, n in enumerate(num_tubes) for _ in range(int(n))],
                           dtype=jnp.int32)
    sfc_bt = sfc_n[tube2vid]                                     # (B, J)
    sfi_bt = sfi_n[tube2vid]                                     # (B, J)
    zJ = jnp.zeros_like(sfc_bt)
    sent_block = jnp.stack([jnp.concatenate([sfc_bt, zJ], axis=1),
                            jnp.concatenate([zJ, sfi_bt], axis=1)],
                           axis=1).astype(jnp.bfloat16)          # (B, 2, 2J)

    # ---- score kernel: one MXU matvec per tube, stacked lane-dense output ----
    scores = tan_scores_call(heads_n, sent_block, mask_row)      # (B, 2, TT)
    con = scores[:, 0].reshape(B, T, T)
    iou = scores[:, 1].reshape(B, T, T)

    # split per video (python ints, mirrors torch.cumsum + cat([0]))
    cumsum = [0]
    for n in num_tubes:
        cumsum.append(cumsum[-1] + int(n))
    contrastive_scores = [con[cumsum[i]:cumsum[i + 1]] for i in range(len(num_tubes))]
    iou_scores = [iou[cumsum[i]:cumsum[i + 1]] for i in range(len(num_tubes))]
    # TODO(synk): training branch (BCE iou loss + contrastive loss) not implemented.
    return contrastive_scores, iou_scores


# ---------------------------------- main ---------------------------------------

if __name__ == "__main__":
    key = jax.random.PRNGKey(0)
    keys = jax.random.split(key, 16)

    num_videos = 2
    num_tubes = [2, 3]        # tubes per video -> batch_total_tubes = 5
    B = sum(num_tubes)
    P = 16                    # num_pre_clips
    C = 8                     # input feature channels
    H = 32                    # hidden_size
    T = 8                     # num_clips
    J = 32                    # joint_space_size
    VOCAB, E, MAXW = 100, 32, 6

    feats_in = jax.random.normal(keys[0], (B, P, C), jnp.float32)
    queries = jax.random.randint(keys[1], (num_videos, MAXW), 0, VOCAB)
    wordlens = jnp.array([4, 6], dtype=jnp.int32)

    params = {
        "w1":  jax.random.normal(keys[2],  (H, C)) * 0.1,
        "b1":  jax.random.normal(keys[3],  (H, 1)) * 0.1,
        "wv":  jax.random.normal(keys[4],  (J, H)) * 0.1,
        "bv":  jax.random.normal(keys[5],  (J,))  * 0.1,
        "wc":  jax.random.normal(keys[6],  (J, H)) * 0.1,
        "bc":  jax.random.normal(keys[7],  (J, 1)) * 0.1,
        "wi":  jax.random.normal(keys[8],  (J, H)) * 0.1,
        "bi":  jax.random.normal(keys[9],  (J, 1)) * 0.1,
        "emb": jax.random.normal(keys[10], (VOCAB, E)) * 0.1,
        "ws":  jax.random.normal(keys[11], (J, E)) * 0.1,
        "bs":  jax.random.normal(keys[12], (J,))  * 0.1,
        "wsi": jax.random.normal(keys[13], (J, E)) * 0.1,
        "bsi": jax.random.normal(keys[14], (J,))  * 0.1,
    }

    contrastive_scores, iou_scores = tan_forward(params, feats_in, queries, wordlens, num_tubes, T)
    jax.block_until_ready((contrastive_scores, iou_scores))

    assert len(contrastive_scores) == num_videos and len(iou_scores) == num_videos
    for i, n in enumerate(num_tubes):
        assert contrastive_scores[i].shape == (n, T, T)
        assert iou_scores[i].shape == (n, T, T)
    print("KERNEL_OK")
</pallas_src>

<mosaic_0001>
module attributes {stable_mosaic.version = 11 : i64} {
  func.func @_tan_fused_kernel(%arg0: i32, %arg1: memref<1x16x8xf32, #tpu.memory_space<vmem>>, %arg2: memref<32x8xbf16, #tpu.memory_space<vmem>>, %arg3: memref<32x1xf32, #tpu.memory_space<vmem>>, %arg4: memref<16x64xbf16, #tpu.memory_space<vmem>>, %arg5: memref<64x32xbf16, #tpu.memory_space<vmem>>, %arg6: memref<64x1xf32, #tpu.memory_space<vmem>>, %arg7: memref<32x32xbf16, #tpu.memory_space<vmem>>, %arg8: memref<1x32xf32, #tpu.memory_space<vmem>>, %arg9: memref<1x64xf32, #tpu.memory_space<vmem>>, %arg10: memref<1x64x64xbf16, #tpu.memory_space<vmem>>, %arg11: memref<1x1x32xf32, #tpu.memory_space<vmem>>) attributes {dimension_semantics = [#tpu.dimension_semantics<parallel>], iteration_bounds = array<i64: 5>, scalar_prefetch = 0 : i64, scratch_operands = 0 : i64, tpu.core_type = #tpu.core_type<tc>, window_params = [{transform_indices = @transform_0, window_bounds = array<i64: 1, 16, 8>}, {pipeline_mode = #tpu.pipeline_mode<synchronous>, transform_indices = @transform_1, window_bounds = array<i64: 32, 8>}, {pipeline_mode = #tpu.pipeline_mode<synchronous>, transform_indices = @transform_2, window_bounds = array<i64: 32, 1>}, {pipeline_mode = #tpu.pipeline_mode<synchronous>, transform_indices = @transform_3, window_bounds = array<i64: 16, 64>}, {pipeline_mode = #tpu.pipeline_mode<synchronous>, transform_indices = @transform_4, window_bounds = array<i64: 64, 32>}, {pipeline_mode = #tpu.pipeline_mode<synchronous>, transform_indices = @transform_5, window_bounds = array<i64: 64, 1>}, {pipeline_mode = #tpu.pipeline_mode<synchronous>, transform_indices = @transform_6, window_bounds = array<i64: 32, 32>}, {pipeline_mode = #tpu.pipeline_mode<synchronous>, transform_indices = @transform_7, window_bounds = array<i64: 1, 32>}, {pipeline_mode = #tpu.pipeline_mode<synchronous>, transform_indices = @transform_8, window_bounds = array<i64: 1, 64>}, {transform_indices = @transform_9, window_bounds = array<i64: 1, 64, 64>}, {transform_indices = @transform_10, window_bounds = array<i64: 1, 1, 32>}]} {
    %c0 = arith.constant 0 : index
    %c0_0 = arith.constant 0 : index
    %c0_1 = arith.constant 0 : index
    %0 = vector.load %arg1[%c0, %c0_0, %c0_1] : memref<1x16x8xf32, #tpu.memory_space<vmem>>, vector<1x16x8xf32>
    %1 = vector.shape_cast %0 : vector<1x16x8xf32> to vector<16x8xf32>
    %2 = arith.truncf %1 : vector<16x8xf32> to vector<16x8xbf16>
    %c0_2 = arith.constant 0 : index
    %c0_3 = arith.constant 0 : index
    %3 = vector.load %arg2[%c0_2, %c0_3] : memref<32x8xbf16, #tpu.memory_space<vmem>>, vector<32x8xbf16>
    %cst = arith.constant dense<0.000000e+00> : vector<32x16xf32>
    %4 = tpu.matmul %3, %2, %cst {dimension_numbers = #tpu.dot_dimension_numbers<[1], [1], [0], [0], [0, 0, 1, 0], [], []>} : vector<32x8xbf16>, vector<16x8xbf16>, vector<32x16xf32> -> vector<32x16xf32>
    %c0_4 = arith.constant 0 : index
    %c0_5 = arith.constant 0 : index
    %5 = vector.load %arg3[%c0_4, %c0_5] : memref<32x1xf32, #tpu.memory_space<vmem>>, vector<32x1xf32>
    %6 = vector.broadcast %5 : vector<32x1xf32> to vector<32x16xf32>
    %7 = arith.addf %4, %6 : vector<32x16xf32>
    %cst_6 = arith.constant 0.000000e+00 : f32
    %8 = vector.broadcast %cst_6 : f32 to vector<32x16xf32>
    %9 = arith.maximumf %7, %8 : vector<32x16xf32>
    %10 = arith.truncf %9 : vector<32x16xf32> to vector<32x16xbf16>
    %c0_7 = arith.constant 0 : index
    %c0_8 = arith.constant 0 : index
    %11 = vector.load %arg4[%c0_7, %c0_8] : memref<16x64xbf16, #tpu.memory_space<vmem>>, vector<16x64xbf16>
    %cst_9 = arith.constant dense<0.000000e+00> : vector<32x64xf32>
    %12 = tpu.matmul %10, %11, %cst_9 {dimension_numbers = #tpu.dot_dimension_numbers<[1], [0], [0], [1], [0, 0, 1, 1], [], []>} : vector<32x16xbf16>, vector<16x64xbf16>, vector<32x64xf32> -> vector<32x64xf32>
    %13 = arith.truncf %12 : vector<32x64xf32> to vector<32x64xbf16>
    %c0_10 = arith.constant 0 : index
    %c0_11 = arith.constant 0 : index
    %14 = vector.load %arg5[%c0_10, %c0_11] : memref<64x32xbf16, #tpu.memory_space<vmem>>, vector<64x32xbf16>
    %cst_12 = arith.constant dense<0.000000e+00> : vector<64x64xf32>
    %15 = tpu.matmul %14, %13, %cst_12 {dimension_numbers = #tpu.dot_dimension_numbers<[1], [0], [0], [1], [0, 0, 1, 1], [], []>} : vector<64x32xbf16>, vector<32x64xbf16>, vector<64x64xf32> -> vector<64x64xf32>
    %c0_13 = arith.constant 0 : index
    %c0_14 = arith.constant 0 : index
    %16 = vector.load %arg6[%c0_13, %c0_14] : memref<64x1xf32, #tpu.memory_space<vmem>>, vector<64x1xf32>
    %17 = vector.broadcast %16 : vector<64x1xf32> to vector<64x64xf32>
    %18 = arith.addf %15, %17 : vector<64x64xf32>
    %c0_15 = arith.constant 0 : index
    %c0_16 = arith.constant 0 : index
    %19 = vector.load %arg9[%c0_15, %c0_16] : memref<1x64xf32, #tpu.memory_space<vmem>>, vector<1x64xf32>
    %20 = vector.broadcast %19 : vector<1x64xf32> to vector<64x64xf32>
    %21 = arith.mulf %18, %20 : vector<64x64xf32>
    %22 = vector.extract_strided_slice %21 {offsets = [0, 0], sizes = [32, 64], strides = [1, 1]} : vector<64x64xf32> to vector<32x64xf32>
    %23 = vector.extract_strided_slice %21 {offsets = [32, 0], sizes = [32, 64], strides = [1, 1]} : vector<64x64xf32> to vector<32x64xf32>
    %24 = arith.mulf %22, %22 : vector<32x64xf32>
    %cst_17 = arith.constant dense<0.000000e+00> : vector<64xf32>
    %25 = vector.multi_reduction <add>, %24, %cst_17 [0] : vector<32x64xf32> to vector<64xf32>
    %26 = vector.shape_cast %25 : vector<64xf32> to vector<1x64xf32>
    %cst_18 = arith.constant 1.000000e-24 : f32
    %27 = vector.broadcast %cst_18 : f32 to vector<1x64xf32>
    %28 = arith.maximumf %26, %27 : vector<1x64xf32>
    %29 = math.rsqrt %28 : vector<1x64xf32>
    %30 = vector.broadcast %29 : vector<1x64xf32> to vector<32x64xf32>
    %31 = arith.mulf %22, %30 : vector<32x64xf32>
    %32 = arith.mulf %23, %23 : vector<32x64xf32>
    %cst_19 = arith.constant dense<0.000000e+00> : vector<64xf32>
    %33 = vector.multi_reduction <add>, %32, %cst_19 [0] : vector<32x64xf32> to vector<64xf32>
    %34 = vector.shape_cast %33 : vector<64xf32> to vector<1x64xf32>
    %cst_20 = arith.constant 1.000000e-24 : f32
    %35 = vector.broadcast %cst_20 : f32 to vector<1x64xf32>
    %36 = arith.maximumf %34, %35 : vector<1x64xf32>
    %37 = math.rsqrt %36 : vector<1x64xf32>
    %38 = vector.broadcast %37 : vector<1x64xf32> to vector<32x64xf32>
    %39 = arith.mulf %23, %38 : vector<32x64xf32>
    %40 = tpu.concatenate %31, %39 in 0 : vector<32x64xf32>, vector<32x64xf32> -> vector<64x64xf32>
    %41 = arith.truncf %40 : vector<64x64xf32> to vector<64x64xbf16>
    %c0_21 = arith.constant 0 : index
    %c0_22 = arith.constant 0 : index
    %c0_23 = arith.constant 0 : index
    %42 = vector.load %arg10[%c0_21, %c0_22, %c0_23] : memref<1x64x64xbf16, #tpu.memory_space<vmem>>, vector<1x64x64xbf16>
    %43 = vector.shape_cast %42 : vector<1x64x64xbf16> to vector<64x64xbf16>
    %44 = vector.shape_cast %41 : vector<64x64xbf16> to vector<1x64x64xbf16>
    tpu.vector_store %arg10[%c0_21, %c0_22, %c0_23], %44 {strides = array<i32>} : memref<1x64x64xbf16, #tpu.memory_space<vmem>>, vector<1x64x64xbf16>,
    %cst_24 = arith.constant 6.250000e-02 : bf16
    %45 = vector.broadcast %cst_24 : bf16 to vector<1x16xbf16>
    %cst_25 = arith.constant dense<0.000000e+00> : vector<1x32xf32>
    %46 = tpu.matmul %45, %10, %cst_25 {dimension_numbers = #tpu.dot_dimension_numbers<[1], [1], [0], [0], [0, 0, 1, 0], [], []>} : vector<1x16xbf16>, vector<32x16xbf16>, vector<1x32xf32> -> vector<1x32xf32>
    %47 = arith.truncf %46 : vector<1x32xf32> to vector<1x32xbf16>
    %c0_26 = arith.constant 0 : index
    %c0_27 = arith.constant 0 : index
    %48 = vector.load %arg7[%c0_26, %c0_27] : memref<32x32xbf16, #tpu.memory_space<vmem>>, vector<32x32xbf16>
    %cst_28 = arith.constant dense<0.000000e+00> : vector<1x32xf32>
    %49 = tpu.matmul %47, %48, %cst_28 {dimension_numbers = #tpu.dot_dimension_numbers<[1], [1], [0], [0], [0, 0, 1, 0], [], []>} : vector<1x32xbf16>, vector<32x32xbf16>, vector<1x32xf32> -> vector<1x32xf32>
    %c0_29 = arith.constant 0 : index
    %c0_30 = arith.constant 0 : index
    %50 = vector.load %arg8[%c0_29, %c0_30] : memref<1x32xf32, #tpu.memory_space<vmem>>, vector<1x32xf32>
    %51 = arith.addf %49, %50 : vector<1x32xf32>
    %c0_31 = arith.constant 0 : index
    %c0_32 = arith.constant 0 : index
    %c0_33 = arith.constant 0 : index
    %52 = vector.load %arg11[%c0_31, %c0_32, %c0_33] : memref<1x1x32xf32, #tpu.memory_space<vmem>>, vector<1x1x32xf32>
    %53 = vector.shape_cast %52 : vector<1x1x32xf32> to vector<1x32xf32>
    %54 = vector.shape_cast %51 : vector<1x32xf32> to vector<1x1x32xf32>
    tpu.vector_store %arg11[%c0_31, %c0_32, %c0_33], %54 {strides = array<i32>} : memref<1x1x32xf32, #tpu.memory_space<vmem>>, vector<1x1x32xf32>,
    return
  }
  func.func @transform_0(%arg0: i32) -> (i32, i32, i32) {
    %c0_i32 = arith.constant 0 : i32
    %c0_i32_0 = arith.constant 0 : i32
    %c0_i32_1 = arith.constant 0 : i32
    return %arg0, %c0_i32, %c0_i32_0 : i32, i32, i32
  }
  func.func @transform_1(%arg0: i32) -> (i32, i32) {
    %c0_i32 = arith.constant 0 : i32
    %c0_i32_0 = arith.constant 0 : i32
    %c0_i32_1 = arith.constant 0 : i32
    return %c0_i32, %c0_i32_0 : i32, i32
  }
  func.func @transform_2(%arg0: i32) -> (i32, i32) {
    %c0_i32 = arith.constant 0 : i32
    %c0_i32_0 = arith.constant 0 : i32
    %c0_i32_1 = arith.constant 0 : i32
    return %c0_i32, %c0_i32_0 : i32, i32
  }
  func.func @transform_3(%arg0: i32) -> (i32, i32) {
    %c0_i32 = arith.constant 0 : i32
    %c0_i32_0 = arith.constant 0 : i32
    %c0_i32_1 = arith.constant 0 : i32
    return %c0_i32, %c0_i32_0 : i32, i32
  }
  func.func @transform_4(%arg0: i32) -> (i32, i32) {
    %c0_i32 = arith.constant 0 : i32
    %c0_i32_0 = arith.constant 0 : i32
    %c0_i32_1 = arith.constant 0 : i32
    return %c0_i32, %c0_i32_0 : i32, i32
  }
  func.func @transform_5(%arg0: i32) -> (i32, i32) {
    %c0_i32 = arith.constant 0 : i32
    %c0_i32_0 = arith.constant 0 : i32
    %c0_i32_1 = arith.constant 0 : i32
    return %c0_i32, %c0_i32_0 : i32, i32
  }
  func.func @transform_6(%arg0: i32) -> (i32, i32) {
    %c0_i32 = arith.constant 0 : i32
    %c0_i32_0 = arith.constant 0 : i32
    %c0_i32_1 = arith.constant 0 : i32
    return %c0_i32, %c0_i32_0 : i32, i32
  }
  func.func @transform_7(%arg0: i32) -> (i32, i32) {
    %c0_i32 = arith.constant 0 : i32
    %c0_i32_0 = arith.constant 0 : i32
    %c0_i32_1 = arith.constant 0 : i32
    return %c0_i32, %c0_i32_0 : i32, i32
  }
  func.func @transform_8(%arg0: i32) -> (i32, i32) {
    %c0_i32 = arith.constant 0 : i32
    %c0_i32_0 = arith.constant 0 : i32
    %c0_i32_1 = arith.constant 0 : i32
    return %c0_i32, %c0_i32_0 : i32, i32
  }
  func.func @transform_9(%arg0: i32) -> (i32, i32, i32) {
    %c0_i32 = arith.constant 0 : i32
    %c0_i32_0 = arith.constant 0 : i32
    %c0_i32_1 = arith.constant 0 : i32
    return %arg0, %c0_i32, %c0_i32_0 : i32, i32, i32
  }
  func.func @transform_10(%arg0: i32) -> (i32, i32, i32) {
    %c0_i32 = arith.constant 0 : i32
    %c0_i32_0 = arith.constant 0 : i32
    %c0_i32_1 = arith.constant 0 : i32
    return %arg0, %c0_i32, %c0_i32_0 : i32, i32, i32
  }
}

</mosaic_0001>

<llo_original>
// kernel: tpu_custom_call.1
$region0: #{tpu_custom_call.1}
  #allocation0 [shape = 'u32[]', space=smem, size = 0x4, offset = 0x4, fixed_abs, tag = 'smem constant byte address 0x4 - core index']
  #allocation1 [shape = 'u32[144,128]{1,0:T(1,128)}', space=vmem, size = 0x12000, scoped, tag = 'internal scratch']
  %s0 = inlined_call_operand.vmem [shape: f32[5,16,8], index: 0, kind: input, shape index: {}]
  %s1 = inlined_call_operand.vmem [shape: bf16[32,8], index: 1, kind: input, shape index: {}]
  %s2 = inlined_call_operand.vmem [shape: f32[32,1], index: 2, kind: input, shape index: {}]
  %s3 = inlined_call_operand.vmem [shape: bf16[16,64], index: 3, kind: input, shape index: {}]
  %s4 = inlined_call_operand.vmem [shape: bf16[64,32], index: 4, kind: input, shape index: {}]
  %s5 = inlined_call_operand.vmem [shape: f32[64,1], index: 5, kind: input, shape index: {}]
  %s6 = inlined_call_operand.vmem [shape: bf16[32,32], index: 6, kind: input, shape index: {}]
  %s7 = inlined_call_operand.vmem [shape: f32[1,32], index: 7, kind: input, shape index: {}]
  %s8 = inlined_call_operand.vmem [shape: f32[1,64], index: 8, kind: input, shape index: {}]
  %s9 = inlined_call_operand.hbm [shape: bf16[5,64,64], index: 9, kind: output, shape index: {0}]
  %s10 = inlined_call_operand.hbm [shape: f32[5,1,32], index: 10, kind: output, shape index: {1}]
  %11 = xla_tuple %s9, %s10
  %s12 = sld [smem:[#allocation0]]
  $region77: #{tpu_custom_call.1} parent=0
    _
  %s14 = ssub.s32 1, %s12
  %s15 = scalar_select 0, %s14, %s12
  $region1: #{tpu_custom_call.1} parent=0
    #allocation2 [shape = 'u8[32768]{0}', space=vmem, size = 0x8000, scoped, tag = 'output window, operand 0']
    #allocation3 [shape = 's32[2]{0}', space=sflag, size = 0x8, scoped, tag = 'scoped memory for tpu_custom_call.1']
    #allocation4 [shape = 'u8[1024]{0}', space=vmem, size = 0x400, scoped, tag = 'output window, operand 1']
    #allocation5 [shape = 's32[2]{0}', space=sflag, size = 0x8, scoped, tag = 'scoped memory for tpu_custom_call.1']
    %16 = vsyncpa [#allocation3], 0
    %s17 = scalar_lea.sflag [#allocation3], 1
    %18 = vsyncpa %s17, 0
    %19 = vsyncpa [#allocation5], 0
    %s20 = scalar_lea.sflag [#allocation5], 1
    %21 = vsyncpa %s20, 0
    loop: start=0, step=1, limit=7
    $region2: #{tpu_custom_call.1} parent=1 // loop_pre_header
      _
    $region3: #{tpu_custom_call.1} parent=1 // loop_header
      %s23 = sphi 0, %s27
      %p24 = scmp.ge.s32.totalorder %s23, 7
      %s33 = sphi 0, %s35
      %s36 = sphi 0, %s33
      %s37 = sphi 0, %s36
      %s53 = sphi 0, %s37
      %s57 = sphi 0, %s57
      %s59 = sphi 0, %s57
      %s60 = sphi 0, %s59
      %s74 = sphi 0, %s60
      %s78 = sphi 0, %s78
      %s80 = sphi 0, %s78
      %s81 = sphi 0, %s80
      %s95 = sphi 0, %s81
      %s99 = sphi 0, %s99
      %s101 = sphi 0, %s99
      %s102 = sphi 0, %s101
      %s116 = sphi 0, %s102
      %s120 = sphi 0, %s120
      %s122 = sphi 0, %s120
      %s123 = sphi 0, %s122
      %s137 = sphi 0, %s123
      %s141 = sphi 0, %s141
      %s143 = sphi 0, %s141
      %s144 = sphi 0, %s143
      %s158 = sphi 0, %s144
      %s162 = sphi 0, %s162
      %s164 = sphi 0, %s162
      %s165 = sphi 0, %s164
      %s179 = sphi 0, %s165
      %s183 = sphi 0, %s183
      %s185 = sphi 0, %s183
      %s186 = sphi 0, %s185
      %s200 = sphi 0, %s186
      %s204 = sphi 0, %s204
      %s206 = sphi 0, %s204
      %s207 = sphi 0, %s206
      %s221 = sphi 0, %s207
      %s227 = sphi 0, %s229
      %s230 = sphi 0, %s227
      %s231 = sphi 0, %s230
      %s247 = sphi 0, %s231
      %s253 = sphi 0, %s255
      %s256 = sphi 0, %s253
      %s257 = sphi 0, %s256
      %s273 = sphi 0, %s257
    $region4: #{tpu_custom_call.1} parent=1 // loop_header_branch
      %26 = sbr.rel (%p24) target = $region8
    $region5: #{tpu_custom_call.1} parent=1 // loop_body
      %s28 = ssub.s32 %s23, 1
      %s29 = ssub.s32 %s23, 2
      %s30 = sadd.s32 %s23, 1
      %s31 = ssub.s32 %s23, %s30
      %p32 = scmp.eq.s32.totalorder %s31, 0
      %s34 = sadd.s32 %s33, 1
      %s35 = scalar_select %p32, %s33, %s34
      %p38 = pneg %p32
      %p39 = scmp.eq.s32.totalorder %s23, 4
      %p40 = por %p38, %p39
      %p41 = scmp.ne.s32.totalorder %s33, %s36
      %p42 = scmp.eq.s32.totalorder %s23, 0
      %p43 = por %p41, %p42
      %p44 = scmp.ne.s32.totalorder %s33, %s36
      %p45 = scmp.eq.s32.totalorder %s28, 4
      %p46 = por %p44, %p45
      %p47 = scmp.ne.s32.totalorder %s36, %s37
      %p48 = scmp.eq.s32.totalorder %s28, 0
      %p49 = por %p47, %p48
      %p50 = scmp.ne.s32.totalorder %s36, %s37
      %p51 = scmp.eq.s32.totalorder %s29, 4
      %p52 = por %p50, %p51
      %p54 = scmp.ne.s32.totalorder %s37, %s53
      %p55 = scmp.eq.s32.totalorder %s29, 0
      %p56 = por %p54, %p55
      %s58 = sadd.s32 %s57, 1
      %p61 = scmp.eq.s32.totalorder %s23, 4
      %p62 = scmp.ne.s32.totalorder %s57, %s59
      %p63 = scmp.eq.s32.totalorder %s23, 0
      %p64 = por %p62, %p63
      %p65 = scmp.ne.s32.totalorder %s57, %s59
      %p66 = scmp.eq.s32.totalorder %s28, 4
      %p67 = por %p65, %p66
      %p68 = scmp.ne.s32.totalorder %s59, %s60
      %p69 = scmp.eq.s32.totalorder %s28, 0
      %p70 = por %p68, %p69
      %p71 = scmp.ne.s32.totalorder %s59, %s60
      %p72 = scmp.eq.s32.totalorder %s29, 4
      %p73 = por %p71, %p72
      %p75 = scmp.ne.s32.totalorder %s60, %s74
      %p76 = scmp.eq.s32.totalorder %s29, 0
      %p77 = por %p75, %p76
      %s79 = sadd.s32 %s78, 1
      %p82 = scmp.eq.s32.totalorder %s23, 4
      %p83 = scmp.ne.s32.totalorder %s78, %s80
      %p84 = scmp.eq.s32.totalorder %s23, 0
      %p85 = por %p83, %p84
      %p86 = scmp.ne.s32.totalorder %s78, %s80
      %p87 = scmp.eq.s32.totalorder %s28, 4
      %p88 = por %p86, %p87
      %p89 = scmp.ne.s32.totalorder %s80, %s81
      %p90 = scmp.eq.s32.totalorder %s28, 0
      %p91 = por %p89, %p90
      %p92 = scmp.ne.s32.totalorder %s80, %s81
      %p93 = scmp.eq.s32.totalorder %s29, 4
      %p94 = por %p92, %p93
      %p96 = scmp.ne.s32.totalorder %s81, %s95
      %p97 = scmp.eq.s32.totalorder %s29, 0
      %p98 = por %p96, %p97
      %s100 = sadd.s32 %s99, 1
      %p103 = scmp.eq.s32.totalorder %s23, 4
      %p104 = scmp.ne.s32.totalorder %s99, %s101
      %p105 = scmp.eq.s32.totalorder %s23, 0
      %p106 = por %p104, %p105
      %p107 = scmp.ne.s32.totalorder %s99, %s101
      %p108 = scmp.eq.s32.totalorder %s28, 4
      %p109 = por %p107, %p108
      %p110 = scmp.ne.s32.totalorder %s101, %s102
      %p111 = scmp.eq.s32.totalorder %s28, 0
      %p112 = por %p110, %p111
      %p113 = scmp.ne.s32.totalorder %s101, %s102
      %p114 = scmp.eq.s32.totalorder %s29, 4
      %p115 = por %p113, %p114
      %p117 = scmp.ne.s32.totalorder %s102, %s116
      %p118 = scmp.eq.s32.totalorder %s29, 0
      %p119 = por %p117, %p118
      %s121 = sadd.s32 %s120, 1
      %p124 = scmp.eq.s32.totalorder %s23, 4
      %p125 = scmp.ne.s32.totalorder %s120, %s122
      %p126 = scmp.eq.s32.totalorder %s23, 0
      %p127 = por %p125, %p126
      %p128 = scmp.ne.s32.totalorder %s120, %s122
      %p129 = scmp.eq.s32.totalorder %s28, 4
      %p130 = por %p128, %p129
      %p131 = scmp.ne.s32.totalorder %s122, %s123
      %p132 = scmp.eq.s32.totalorder %s28, 0
      %p133 = por %p131, %p132
      %p134 = scmp.ne.s32.totalorder %s122, %s123
      %p135 = scmp.eq.s32.totalorder %s29, 4
      %p136 = por %p134, %p135
      %p138 = scmp.ne.s32.totalorder %s123, %s137
      %p139 = scmp.eq.s32.totalorder %s29, 0
      %p140 = por %p138, %p139
      %s142 = sadd.s32 %s141, 1
      %p145 = scmp.eq.s32.totalorder %s23, 4
      %p146 = scmp.ne.s32.totalorder %s141, %s143
      %p147 = scmp.eq.s32.totalorder %s23, 0
      %p148 = por %p146, %p147
      %p149 = scmp.ne.s32.totalorder %s141, %s143
      %p150 = scmp.eq.s32.totalorder %s28, 4
      %p151 = por %p149, %p150
      %p152 = scmp.ne.s32.totalorder %s143, %s144
      %p153 = scmp.eq.s32.totalorder %s28, 0
      %p154 = por %p152, %p153
      %p155 = scmp.ne.s32.totalorder %s143, %s144
      %p156 = scmp.eq.s32.totalorder %s29, 4
      %p157 = por %p155, %p156
      %p159 = scmp.ne.s32.totalorder %s144, %s158
      %p160 = scmp.eq.s32.totalorder %s29, 0
      %p161 = por %p159, %p160
      %s163 = sadd.s32 %s162, 1
      %p166 = scmp.eq.s32.totalorder %s23, 4
      %p167 = scmp.ne.s32.totalorder %s162, %s164
      %p168 = scmp.eq.s32.totalorder %s23, 0
      %p169 = por %p167, %p168
      %p170 = scmp.ne.s32.totalorder %s162, %s164
      %p171 = scmp.eq.s32.totalorder %s28, 4
      %p172 = por %p170, %p171
      %p173 = scmp.ne.s32.totalorder %s164, %s165
      %p174 = scmp.eq.s32.totalorder %s28, 0
      %p175 = por %p173, %p174
      %p176 = scmp.ne.s32.totalorder %s164, %s165
      %p177 = scmp.eq.s32.totalorder %s29, 4
      %p178 = por %p176, %p177
      %p180 = scmp.ne.s32.totalorder %s165, %s179
      %p181 = scmp.eq.s32.totalorder %s29, 0
      %p182 = por %p180, %p181
      %s184 = sadd.s32 %s183, 1
      %p187 = scmp.eq.s32.totalorder %s23, 4
      %p188 = scmp.ne.s32.totalorder %s183, %s185
      %p189 = scmp.eq.s32.totalorder %s23, 0
      %p190 = por %p188, %p189
      %p191 = scmp.ne.s32.totalorder %s183, %s185
      %p192 = scmp.eq.s32.totalorder %s28, 4
      %p193 = por %p191, %p192
      %p194 = scmp.ne.s32.totalorder %s185, %s186
      %p195 = scmp.eq.s32.totalorder %s28, 0
      %p196 = por %p194, %p195
      %p197 = scmp.ne.s32.totalorder %s185, %s186
      %p198 = scmp.eq.s32.totalorder %s29, 4
      %p199 = por %p197, %p198
      %p201 = scmp.ne.s32.totalorder %s186, %s200
      %p202 = scmp.eq.s32.totalorder %s29, 0
      %p203 = por %p201, %p202
      %s205 = sadd.s32 %s204, 1
      %p208 = scmp.eq.s32.totalorder %s23, 4
      %p209 = scmp.ne.s32.totalorder %s204, %s206
      %p210 = scmp.eq.s32.totalorder %s23, 0
      %p211 = por %p209, %p210
      %p212 = scmp.ne.s32.totalorder %s204, %s206
      %p213 = scmp.eq.s32.totalorder %s28, 4
      %p214 = por %p212, %p213
      %p215 = scmp.ne.s32.totalorder %s206, %s207
      %p216 = scmp.eq.s32.totalorder %s28, 0
      %p217 = por %p215, %p216
      %p218 = scmp.ne.s32.totalorder %s206, %s207
      %p219 = scmp.eq.s32.totalorder %s29, 4
      %p220 = por %p218, %p219
      %p222 = scmp.ne.s32.totalorder %s207, %s221
      %p223 = scmp.eq.s32.totalorder %s29, 0
      %p224 = por %p222, %p223
      %s225 = ssub.s32 %s23, %s30
      %p226 = scmp.eq.s32.totalorder %s225, 0
      %s228 = sadd.s32 %s227, 1
      %s229 = scalar_select %p226, %s227, %s228
      %p232 = pneg %p226
      %p233 = scmp.eq.s32.totalorder %s23, 4
      %p234 = por %p232, %p233
      %p235 = scmp.ne.s32.totalorder %s227, %s230
      %p236 = scmp.eq.s32.totalorder %s23, 0
      %p237 = por %p235, %p236
      %p238 = scmp.ne.s32.totalorder %s227, %s230
      %p239 = scmp.eq.s32.totalorder %s28, 4
      %p240 = por %p238, %p239
      %p241 = scmp.ne.s32.totalorder %s230, %s231
      %p242 = scmp.eq.s32.totalorder %s28, 0
      %p243 = por %p241, %p242
      %p244 = scmp.ne.s32.totalorder %s230, %s231
      %p245 = scmp.eq.s32.totalorder %s29, 4
      %p246 = por %p244, %p245
      %p248 = scmp.ne.s32.totalorder %s231, %s247
      %p249 = scmp.eq.s32.totalorder %s29, 0
      %p250 = por %p248, %p249
      %s251 = ssub.s32 %s23, %s30
      %p252 = scmp.eq.s32.totalorder %s251, 0
      %s254 = sadd.s32 %s253, 1
      %s255 = scalar_select %p252, %s253, %s254
      %p258 = pneg %p252
      %p259 = scmp.eq.s32.totalorder %s23, 4
      %p260 = por %p258, %p259
      %p261 = scmp.ne.s32.totalorder %s253, %s256
      %p262 = scmp.eq.s32.totalorder %s23, 0
      %p263 = por %p261, %p262
      %p264 = scmp.ne.s32.totalorder %s253, %s256
      %p265 = scmp.eq.s32.totalorder %s28, 4
      %p266 = por %p264, %p265
      %p267 = scmp.ne.s32.totalorder %s256, %s257
      %p268 = scmp.eq.s32.totalorder %s28, 0
      %p269 = por %p267, %p268
      %p270 = scmp.ne.s32.totalorder %s256, %s257
      %p271 = scmp.eq.s32.totalorder %s29, 4
      %p272 = por %p270, %p271
      %p274 = scmp.ne.s32.totalorder %s257, %s273
      %p275 = scmp.eq.s32.totalorder %s29, 0
      %p276 = por %p274, %p275
      %p277 = scmp.le.s32.totalorder 1, %s23
      %p278 = scmp.lt.s32.totalorder %s23, 6
      %p279 = pnand %p277, %p278
      %p280 = pneg %p279
      // Predicated region
      $region9: #{tpu_custom_call.1} parent=5 // pred_check
        _
      $region10: #{tpu_custom_call.1} parent=5 // pred_check_branch
        %282 = sbr.rel (%p279) target = $region12
      $region11: #{tpu_custom_call.1} parent=5 // pred_region
        %s283 = ssub.s32 %s23, 1
        // Predicated region
        $region13: #{tpu_custom_call.1} parent=11 // pred_check
          %p284 = pneg %p70
        $region14: #{tpu_custom_call.1} parent=11 // pred_check_branch
          %286 = sbr.rel (%p284) target = $region16
        $region15: #{tpu_custom_call.1} parent=11 // pred_region
          _
        $region16: #{tpu_custom_call.1} parent=11 // pred_fallthru
          _
        // Predicated region
        $region17: #{tpu_custom_call.1} parent=11 // pred_check
          %p287 = pneg %p91
        $region18: #{tpu_custom_call.1} parent=11 // pred_check_branch
          %289 = sbr.rel (%p287) target = $region20
        $region19: #{tpu_custom_call.1} parent=11 // pred_region
          _
        $region20: #{tpu_custom_call.1} parent=11 // pred_fallthru
          _
        // Predicated region
        $region21: #{tpu_custom_call.1} parent=11 // pred_check
          %p290 = pneg %p112
        $region22: #{tpu_custom_call.1} parent=11 // pred_check_branch
          %292 = sbr.rel (%p290) target = $region24
        $region23: #{tpu_custom_call.1} parent=11 // pred_region
          _
        $region24: #{tpu_custom_call.1} parent=11 // pred_fallthru
          _
        // Predicated region
        $region25: #{tpu_custom_call.1} parent=11 // pred_check
          %p293 = pneg %p133
        $region26: #{tpu_custom_call.1} parent=11 // pred_check_branch
          %295 = sbr.rel (%p293) target = $region28
        $region27: #{tpu_custom_call.1} parent=11 // pred_region
          _
        $region28: #{tpu_custom_call.1} parent=11 // pred_fallthru
          _
        // Predicated region
        $region29: #{tpu_custom_call.1} parent=11 // pred_check
          %p296 = pneg %p154
        $region30: #{tpu_custom_call.1} parent=11 // pred_check_branch
          %298 = sbr.rel (%p296) target = $region32
        $region31: #{tpu_custom_call.1} parent=11 // pred_region
          _
        $region32: #{tpu_custom_call.1} parent=11 // pred_fallthru
          _
        // Predicated region
        $region33: #{tpu_custom_call.1} parent=11 // pred_check
          %p299 = pneg %p175
        $region34: #{tpu_custom_call.1} parent=11 // pred_check_branch
          %301 = sbr.rel (%p299) target = $region36
        $region35: #{tpu_custom_call.1} parent=11 // pred_region
          _
        $region36: #{tpu_custom_call.1} parent=11 // pred_fallthru
          _
        // Predicated region
        $region37: #{tpu_custom_call.1} parent=11 // pred_check
          %p302 = pneg %p196
        $region38: #{tpu_custom_call.1} parent=11 // pred_check_branch
          %304 = sbr.rel (%p302) target = $region40
        $region39: #{tpu_custom_call.1} parent=11 // pred_region
          _
        $region40: #{tpu_custom_call.1} parent=11 // pred_fallthru
          _
        // Predicated region
        $region41: #{tpu_custom_call.1} parent=11 // pred_check
          %p305 = pneg %p217
        $region42: #{tpu_custom_call.1} parent=11 // pred_check_branch
          %307 = sbr.rel (%p305) target = $region44
        $region43: #{tpu_custom_call.1} parent=11 // pred_region
          _
        $region44: #{tpu_custom_call.1} parent=11 // pred_fallthru
          _
      $region12: #{tpu_custom_call.1} parent=5 // pred_fallthru
        _
      %p308 = scmp.lt.s32.totalorder %s23, 5
      // Predicated region
      $region45: #{tpu_custom_call.1} parent=5 // pred_check
        %p309 = pneg %p308
      $region46: #{tpu_custom_call.1} parent=5 // pred_check_branch
        %311 = sbr.rel (%p309) target = $region48
      $region47: #{tpu_custom_call.1} parent=5 // pred_region
        // Predicated region
        $region49: #{tpu_custom_call.1} parent=47 // pred_check
          %p312 = pneg %p43
        $region50: #{tpu_custom_call.1} parent=47 // pred_check_branch
          %314 = sbr.rel (%p312) target = $region52
        $region51: #{tpu_custom_call.1} parent=47 // pred_region
          %p315 = scmp.lt.s32.totalorder %s23, 4
          %s316 = scalar_select %p315, %s23, 4
          %s317 = smul.addr %s316, 2
          %s318 = smul.addr %s317, 8
          %s319 = scalar_lea.vmem %s0, %s318
        $region52: #{tpu_custom_call.1} parent=47 // pred_fallthru
          _
      $region48: #{tpu_custom_call.1} parent=5 // pred_fallthru
        _
      %p320 = scmp.le.s32.totalorder 1, %s23
      %p321 = scmp.lt.s32.totalorder %s23, 6
      %p322 = pnand %p320, %p321
      %p323 = pneg %p322
      // Predicated region
      $region53: #{tpu_custom_call.1} parent=5 // pred_check
        _
      $region54: #{tpu_custom_call.1} parent=5 // pred_check_branch
        %325 = sbr.rel (%p322) target = $region56
      $region55: #{tpu_custom_call.1} parent=5 // pred_region
        %s326 = ssub.s32 %s23, 1
        %p327 = scmp.lt.s32.totalorder %s28, 4
        %s328 = scalar_select %p327, %s28, 4
        %s329 = smul.addr %s328, 2
        %s330 = smul.addr %s329, 8
        %s331 = scalar_lea.vmem %s0, %s330
        %p332 = pneg %p49
        %p333 = pneg %p46
        %p334 = pneg %p70
        %p335 = pneg %p67
        %p336 = pneg %p91
        %p337 = pneg %p88
        %p338 = pneg %p112
        %p339 = pneg %p109
        %p340 = pneg %p133
        %p341 = pneg %p130
        %p342 = pneg %p154
        %p343 = pneg %p151
        %p344 = pneg %p175
        %p345 = pneg %p172
        %p346 = pneg %p196
        %p347 = pneg %p193
        %p348 = pneg %p217
        %p349 = pneg %p214
        %p350 = pneg %p243
        %p351 = pneg %p240
        %s352 = sand.u32 %s230, 1
        %s353 = scalar_lea.sflag [#allocation3], %s352
        %s354 = sand.u32 %s230, 1
        %s355 = smul.addr %s354, 32
        %s356 = scalar_lea.vmem [#allocation2], %s355
        %p357 = pneg %p269
        %p358 = pneg %p266
        %s359 = sand.u32 %s256, 1
        %s360 = scalar_lea.sflag [#allocation5], %s359
        %s361 = sand.u32 %s256, 1
        %s362 = scalar_lea.vmem [#allocation4], %s361
        %p363 = scmp.lt.s32.totalorder %s28, 4
        %s364 = scalar_select %p363, %s28, 4
        %s365 = smul.addr %s364, 2
        %s366 = smul.addr %s365, 8
        %s367 = scalar_lea.vmem %s0, %s366
        %v370 = vld [vmem:[%s367] sm:$0xff]
        %v371 = vld [vmem:[%s367 + $0x8] sm:$0xff]
        %v372 = vpack.c.bf16 %v371, %v370
        %v373 = vld [vmem:[%s1] sm:$0xf]
        %v374 = vld [vmem:[%s1 + $0x4] sm:$0xf]
        %v375 = vld [vmem:[%s1 + $0x8] sm:$0xf]
        %v376 = vld [vmem:[%s1 + $0xc] sm:$0xf]
        %v377 = vld [vmem:[%s2] sm:$0xff]
        %v378 = vld [vmem:[%s2 + $0x8] sm:$0xff]
        %v379 = vld [vmem:[%s2 + $0x10] sm:$0xff]
        %v380 = vld [vmem:[%s2 + $0x18] sm:$0xff]
        %382 = vset.pattern.permute.xlu0 0
        %383 = vperm.xlu0 %382, %v377
        %v384 = vpop.permute.xlu0 %383
        %387 = vset.pattern.permute.xlu0 0
        %388 = vperm.xlu0 %387, %v378
        %v389 = vpop.permute.xlu0 %388
        %392 = vset.pattern.permute.xlu0 0
        %393 = vperm.xlu0 %392, %v379
        %v394 = vpop.permute.xlu0 %393
        %397 = vset.pattern.permute.xlu0 0
        %398 = vperm.xlu0 %397, %v380
        %v399 = vpop.permute.xlu0 %398
        %v405 = vunpack.c.l.b16 %v373
        %v406 = vunpack.c.l.b16 %v374
        %v407 = vunpack.c.l.b16 %v375
        %v408 = vunpack.c.l.b16 %v376
        %v409 = vpack.c.b16 %v406, %v405
        %v410 = vpack.c.b16 %v408, %v407
        %vm411 = vcmask 64512
        %v413 = vsel %vm411, %v409, 0
        %v416 = vsel %vm411, %v410, 0
        %v419 = vsel %vm411, %v372, 0
        %421 = vmatprep.subr.bf16.mxu0 0
        %422 = vmatpush1.bf16.xpose.msra.mxu0 %v419
        %423 = vmatprep.subr.bf16.mxu0 0
        %424 = vmatpush1.bf16.xpose.msra.mxu0 0
        %425 = vmatprep.subr.bf16.mxu0 0
        %426 = vmatpush1.bf16.xpose.msra.mxu0 0
        %427 = vmatprep.subr.bf16.mxu0 0
        %428 = vmatpush1.bf16.xpose.msra.mxu0 0
        %429 = vmatprep.subr.bf16.mxu0 0
        %430 = vmatpush1.bf16.xpose.msra.mxu0 0
        %431 = vmatprep.subr.bf16.mxu0 0
        %432 = vmatpush1.bf16.xpose.msra.mxu0 0
        %433 = vmatprep.subr.bf16.mxu0 0
        %434 = vmatpush1.bf16.xpose.msra.mxu0 0
        %435 = vmatprep.subr.bf16.mxu0 0
        %436 = vmatpush1.bf16.xpose.msra.mxu0 0
        %437 = vmatprep.subr.bf16.mxu0 0
        %438 = vmatpush1.bf16.xpose.msra.mxu0 0
        %439 = vmatprep.subr.bf16.mxu0 0
        %440 = vmatpush1.bf16.xpose.msra.mxu0 0
        %441 = vmatprep.subr.bf16.mxu0 0
        %442 = vmatpush1.bf16.xpose.msra.mxu0 0
        %443 = vmatprep.subr.bf16.mxu0 0
        %444 = vmatpush1.bf16.xpose.msra.mxu0 0
        %445 = vmatprep.subr.bf16.mxu0 0
        %446 = vmatpush1.bf16.xpose.msra.mxu0 0
        %447 = vmatprep.subr.bf16.mxu0 0
        %448 = vmatpush1.bf16.xpose.msra.mxu0 0
        %449 = vmatprep.subr.bf16.mxu0 0
        %450 = vmatpush1.bf16.xpose.msra.mxu0 0
        %451 = vmatprep.subr.bf16.mxu0 0
        %452 = vmatpush1.bf16.xpose.msra.mxu0 0
        %453 = vmatprep.mubr.bf16.mxu0 0
        %454 = vmatmul.mubr.bf16.gmra.mrb[0].mxu0 %v413
        %v455 = vpop.f32.mrb[0].mxu0
        %v456 = vadd.f32 %v384, %v455
        %v457 = vpop.f32.mrb[0].mxu0
        %v458 = vpop.f32.mrb[0].mxu0
        %v459 = vadd.f32 %v389, %v458
        %v460 = vpop.f32.mrb[0].mxu0
        %461 = vmatprep.mubr.bf16.mxu0 0
        %462 = vmatmul.mubr.bf16.gmra.mrb[0].mxu0 %v416
        %v463 = vpop.f32.mrb[0].mxu0
        %v464 = vadd.f32 %v394, %v463
        %v465 = vpop.f32.mrb[0].mxu0
        %v466 = vpop.f32.mrb[0].mxu0
        %v467 = vadd.f32 %v399, %v466
        %v468 = vpop.f32.mrb[0].mxu0
        %469 = vdwg.mxu0
        %v470 = vmax.f32 %v456, 0.0
        %v471 = vmax.f32 %v459, 0.0
        %v472 = vmax.f32 %v464, 0.0
        %v473 = vmax.f32 %v467, 0.0
        %v474 = vpack.c.bf16 %v471, %v470
        %v475 = vpack.c.bf16 %v473, %v472
        %v476 = vld [vmem:[%s3] sm:$0xf]
        %v477 = vld [vmem:[%s3 + $0x4] sm:$0xf]
        %v480 = vunpack.c.l.b16 %v476
        %v481 = vunpack.c.l.b16 %v477
        %v482 = vpack.c.b16 %v481, %v480
        %vm484 = vcmask 130048
        %v486 = vsel %vm484, %v474, 0
        %v489 = vsel %vm484, %v475, 0
        %491 = vmatprep.subr.bf16.mxu0 0
        %492 = vmatpush1.bf16.msra.mxu0 %v482
        %493 = vmatprep.subr.bf16.mxu0 0
        %494 = vmatpush1.bf16.msra.mxu0 0
        %495 = vmatprep.subr.bf16.mxu0 0
        %496 = vmatpush1.bf16.msra.mxu0 0
        %497 = vmatprep.subr.bf16.mxu0 0
        %498 = vmatpush1.bf16.msra.mxu0 0
        %499 = vmatprep.subr.bf16.mxu0 0
        %500 = vmatpush1.bf16.msra.mxu0 0
        %501 = vmatprep.subr.bf16.mxu0 0
        %502 = vmatpush1.bf16.msra.mxu0 0
        %503 = vmatprep.subr.bf16.mxu0 0
        %504 = vmatpush1.bf16.msra.mxu0 0
        %505 = vmatprep.subr.bf16.mxu0 0
        %506 = vmatpush1.bf16.msra.mxu0 0
        %507 = vmatprep.subr.bf16.mxu0 0
        %508 = vmatpush1.bf16.msra.mxu0 0
        %509 = vmatprep.subr.bf16.mxu0 0
        %510 = vmatpush1.bf16.msra.mxu0 0
        %511 = vmatprep.subr.bf16.mxu0 0
        %512 = vmatpush1.bf16.msra.mxu0 0
        %513 = vmatprep.subr.bf16.mxu0 0
        %514 = vmatpush1.bf16.msra.mxu0 0
        %515 = vmatprep.subr.bf16.mxu0 0
        %516 = vmatpush1.bf16.msra.mxu0 0
        %517 = vmatprep.subr.bf16.mxu0 0
        %518 = vmatpush1.bf16.msra.mxu0 0
        %519 = vmatprep.subr.bf16.mxu0 0
        %520 = vmatpush1.bf16.msra.mxu0 0
        %521 = vmatprep.subr.bf16.mxu0 0
        %522 = vmatpush1.bf16.msra.mxu0 0
        %523 = vmatprep.mubr.bf16.mxu0 0
        %524 = vmatmul.mubr.bf16.gmra.mrb[0].mxu0 %v486
        %v525 = vpop.f32.mrb[0].mxu0
        %v526 = vadd.f32 0.0, %v525
        %v527 = vpop.f32.mrb[0].mxu0
        %v528 = vpop.f32.mrb[0].mxu0
        %v529 = vadd.f32 0.0, %v528
        %v530 = vpop.f32.mrb[0].mxu0
        %531 = vmatprep.mubr.bf16.mxu0 0
        %532 = vmatmul.mubr.bf16.gmra.mrb[0].mxu0 %v489
        %v533 = vpop.f32.mrb[0].mxu0
        %v534 = vadd.f32 0.0, %v533
        %v535 = vpop.f32.mrb[0].mxu0
        %v536 = vpop.f32.mrb[0].mxu0
        %v537 = vadd.f32 0.0, %v536
        %v538 = vpop.f32.mrb[0].mxu0
        %539 = vdwg.mxu0
        %v540 = vpack.c.bf16 %v529, %v526
        %v541 = vpack.c.bf16 %v537, %v534
        %v542 = vld [vmem:[%s4] sm:$0xf]
        %v543 = vld [vmem:[%s4 + $0x4] sm:$0xf]
        %v544 = vld [vmem:[%s4 + $0x8] sm:$0xf]
        %v545 = vld [vmem:[%s4 + $0xc] sm:$0xf]
        %v546 = vld [vmem:[%s4 + $0x10] sm:$0xf]
        %v547 = vld [vmem:[%s4 + $0x14] sm:$0xf]
        %v548 = vld [vmem:[%s4 + $0x18] sm:$0xf]
        %v549 = vld [vmem:[%s4 + $0x1c] sm:$0xf]
        %v550 = vld [vmem:[%s5] sm:$0xff]
        %v551 = vld [vmem:[%s5 + $0x8] sm:$0xff]
        %v552 = vld [vmem:[%s5 + $0x10] sm:$0xff]
        %v553 = vld [vmem:[%s5 + $0x18] sm:$0xff]
        %v554 = vld [vmem:[%s5 + $0x20] sm:$0xff]
        %v555 = vld [vmem:[%s5 + $0x28] sm:$0xff]
        %v556 = vld [vmem:[%s5 + $0x30] sm:$0xff]
        %v557 = vld [vmem:[%s5 + $0x38] sm:$0xff]
        %559 = vset.pattern.permute.xlu0 0
        %560 = vperm.xlu0 %559, %v550
        %v561 = vpop.permute.xlu0 %560
        %564 = vset.pattern.permute.xlu0 0
        %565 = vperm.xlu0 %564, %v551
        %v566 = vpop.permute.xlu0 %565
        %569 = vset.pattern.permute.xlu0 0
        %570 = vperm.xlu0 %569, %v552
        %v571 = vpop.permute.xlu0 %570
        %574 = vset.pattern.permute.xlu0 0
        %575 = vperm.xlu0 %574, %v553
        %v576 = vpop.permute.xlu0 %575
        %579 = vset.pattern.permute.xlu0 0
        %580 = vperm.xlu0 %579, %v554
        %v581 = vpop.permute.xlu0 %580
        %584 = vset.pattern.permute.xlu0 0
        %585 = vperm.xlu0 %584, %v555
        %v586 = vpop.permute.xlu0 %585
        %589 = vset.pattern.permute.xlu0 0
        %590 = vperm.xlu0 %589, %v556
        %v591 = vpop.permute.xlu0 %590
        %594 = vset.pattern.permute.xlu0 0
        %595 = vperm.xlu0 %594, %v557
        %v596 = vpop.permute.xlu0 %595
        %v606 = vunpack.c.l.b16 %v542
        %v607 = vunpack.c.l.b16 %v543
        %v608 = vunpack.c.l.b16 %v544
        %v609 = vunpack.c.l.b16 %v545
        %v610 = vunpack.c.l.b16 %v546
        %v611 = vunpack.c.l.b16 %v547
        %v612 = vunpack.c.l.b16 %v548
        %v613 = vunpack.c.l.b16 %v549
        %v614 = vpack.c.b16 %v607, %v606
        %v615 = vpack.c.b16 %v609, %v608
        %v616 = vpack.c.b16 %v611, %v610
        %v617 = vpack.c.b16 %v613, %v612
        %vm618 = vcmask 261120
        %v620 = vsel %vm618, %v614, 0
        %v623 = vsel %vm618, %v615, 0
        %v626 = vsel %vm618, %v616, 0
        %v629 = vsel %vm618, %v617, 0
        %631 = vmatprep.subr.bf16.mxu0 0
        %632 = vmatpush1.bf16.msra.mxu0 %v540
        %633 = vmatprep.subr.bf16.mxu0 0
        %634 = vmatpush1.bf16.msra.mxu0 %v541
        %635 = vmatprep.subr.bf16.mxu0 0
        %636 = vmatpush1.bf16.msra.mxu0 0
        %637 = vmatprep.subr.bf16.mxu0 0
        %638 = vmatpush1.bf16.msra.mxu0 0
        %639 = vmatprep.subr.bf16.mxu0 0
        %640 = vmatpush1.bf16.msra.mxu0 0
        %641 = vmatprep.subr.bf16.mxu0 0
        %642 = vmatpush1.bf16.msra.mxu0 0
        %643 = vmatprep.subr.bf16.mxu0 0
        %644 = vmatpush1.bf16.msra.mxu0 0
        %645 = vmatprep.subr.bf16.mxu0 0
        %646 = vmatpush1.bf16.msra.mxu0 0
        %647 = vmatprep.subr.bf16.mxu0 0
        %648 = vmatpush1.bf16.msra.mxu0 0
        %649 = vmatprep.subr.bf16.mxu0 0
        %650 = vmatpush1.bf16.msra.mxu0 0
        %651 = vmatprep.subr.bf16.mxu0 0
        %652 = vmatpush1.bf16.msra.mxu0 0
        %653 = vmatprep.subr.bf16.mxu0 0
        %654 = vmatpush1.bf16.msra.mxu0 0
        %655 = vmatprep.subr.bf16.mxu0 0
        %656 = vmatpush1.bf16.msra.mxu0 0
        %657 = vmatprep.subr.bf16.mxu0 0
        %658 = vmatpush1.bf16.msra.mxu0 0
        %659 = vmatprep.subr.bf16.mxu0 0
        %660 = vmatpush1.bf16.msra.mxu0 0
        %661 = vmatprep.subr.bf16.mxu0 0
        %662 = vmatpush1.bf16.msra.mxu0 0
        %663 = vmatprep.mubr.bf16.mxu0 0
        %664 = vmatmul.mubr.bf16.gmra.mrb[0].mxu0 %v620
        %v665 = vpop.f32.mrb[0].mxu0
        %v666 = vadd.f32 %v561, %v665
        %v667 = vpop.f32.mrb[0].mxu0
        %v668 = vpop.f32.mrb[0].mxu0
        %v669 = vadd.f32 %v566, %v668
        %v670 = vpop.f32.mrb[0].mxu0
        %671 = vmatprep.mubr.bf16.mxu0 0
        %672 = vmatmul.mubr.bf16.gmra.mrb[0].mxu0 %v623
        %v673 = vpop.f32.mrb[0].mxu0
        %v674 = vadd.f32 %v571, %v673
        %v675 = vpop.f32.mrb[0].mxu0
        %v676 = vpop.f32.mrb[0].mxu0
        %v677 = vadd.f32 %v576, %v676
        %v678 = vpop.f32.mrb[0].mxu0
        %679 = vmatprep.mubr.bf16.mxu0 0
        %680 = vmatmul.mubr.bf16.gmra.mrb[0].mxu0 %v626
        %v681 = vpop.f32.mrb[0].mxu0
        %v682 = vadd.f32 %v581, %v681
        %v683 = vpop.f32.mrb[0].mxu0
        %v684 = vpop.f32.mrb[0].mxu0
        %v685 = vadd.f32 %v586, %v684
        %v686 = vpop.f32.mrb[0].mxu0
        %687 = vmatprep.mubr.bf16.mxu0 0
        %688 = vmatmul.mubr.bf16.gmra.mrb[0].mxu0 %v629
        %v689 = vpop.f32.mrb[0].mxu0
        %v690 = vadd.f32 %v591, %v689
        %v691 = vpop.f32.mrb[0].mxu0
        %v692 = vpop.f32.mrb[0].mxu0
        %v693 = vadd.f32 %v596, %v692
        %v694 = vpop.f32.mrb[0].mxu0
        %695 = vdwg.mxu0
        %v696 = vld [vmem:[%s8] sm:$0x1]
        %v698 = vlaneseq
        %v699 = vshrl.u32 %v698, 7
        %v700 = vsub.s32 0, %v699
        %v701 = vrot.slane %v696, %v700
        %v703 = vmul.f32 %v666, %v701
        %v704 = vmul.f32 %v669, %v701
        %v705 = vmul.f32 %v674, %v701
        %v706 = vmul.f32 %v677, %v701
        %v707 = vmul.f32 %v682, %v701
        %v708 = vmul.f32 %v685, %v701
        %v709 = vmul.f32 %v690, %v701
        %v710 = vmul.f32 %v693, %v701
        %v711 = vmul.f32 %v703, %v703
        %v712 = vmul.f32 %v704, %v704
        %v713 = vmul.f32 %v705, %v705
        %v714 = vmul.f32 %v706, %v706
        %vm715 = vcmask 523264
        %v716 = vsel %vm715, %v711, 0.0
        %v717 = vsel %vm715, %v712, 0.0
        %v718 = vadd.f32 %v716, %v717
        %v719 = vsel %vm715, %v713, 0.0
        %v720 = vadd.f32 %v718, %v719
        %v721 = vsel %vm715, %v714, 0.0
        %v722 = vadd.f32 %v720, %v721
        %v723 = vrot.slane %v722, 4
        %v724 = vadd.f32 %v722, %v723
        %v725 = vrot.slane %v724, 2
        %v726 = vadd.f32 %v724, %v725
        %v727 = vrot.slane %v726, 1
        %v728 = vadd.f32 %v726, %v727
        %v729 = vmax.f32 %v728, 1e-24
        %v730 = vrsqrt.pop %v729
        %v731 = vmul.f32 %v703, %v730
        %v732 = vmul.f32 %v704, %v730
        %v733 = vmul.f32 %v705, %v730
        %v734 = vmul.f32 %v706, %v730
        %v735 = vmul.f32 %v707, %v707
        %v736 = vmul.f32 %v708, %v708
        %v737 = vmul.f32 %v709, %v709
        %v738 = vmul.f32 %v710, %v710
        %v739 = vsel %vm715, %v735, 0.0
        %v740 = vsel %vm715, %v736, 0.0
        %v741 = vadd.f32 %v739, %v740
        %v742 = vsel %vm715, %v737, 0.0
        %v743 = vadd.f32 %v741, %v742
        %v744 = vsel %vm715, %v738, 0.0
        %v745 = vadd.f32 %v743, %v744
        %v746 = vrot.slane %v745, 4
        %v747 = vadd.f32 %v745, %v746
        %v748 = vrot.slane %v747, 2
        %v749 = vadd.f32 %v747, %v748
        %v750 = vrot.slane %v749, 1
        %v751 = vadd.f32 %v749, %v750
        %v752 = vmax.f32 %v751, 1e-24
        %v753 = vrsqrt.pop %v752
        %v754 = vmul.f32 %v707, %v753
        %v755 = vmul.f32 %v708, %v753
        %v756 = vmul.f32 %v709, %v753
        %v757 = vmul.f32 %v710, %v753
        %v758 = vpack.c.bf16 %v732, %v731
        %v759 = vpack.c.bf16 %v734, %v733
        %v760 = vpack.c.bf16 %v755, %v754
        %v761 = vpack.c.bf16 %v757, %v756
        %v766 = vunpack.c.l.b16 %v758
        %v767 = vunpack.c.h.b16 %v758
        %v768 = vunpack.c.l.b16 %v759
        %v769 = vunpack.c.h.b16 %v759
        %v770 = vunpack.c.l.b16 %v760
        %v771 = vunpack.c.h.b16 %v760
        %v772 = vunpack.c.l.b16 %v761
        %v773 = vunpack.c.h.b16 %v761
        %v774 = vpack.c.b16 %v766, %v766
        %v775 = vpack.c.b16 %v767, %v767
        %v776 = vpack.c.b16 %v768, %v768
        %v777 = vpack.c.b16 %v769, %v769
        %v778 = vpack.c.b16 %v770, %v770
        %v779 = vpack.c.b16 %v771, %v771
        %v780 = vpack.c.b16 %v772, %v772
        %v781 = vpack.c.b16 %v773, %v773
        %vm790 = vcmask 519168
        %791 = vst.msk [vmem:[%s356] sm:$0xf] %vm790, %v774
        %792 = vst.msk [vmem:[%s356 + $0x4] sm:$0xf] %vm790, %v775
        %793 = vst.msk [vmem:[%s356 + $0x8] sm:$0xf] %vm790, %v776
        %794 = vst.msk [vmem:[%s356 + $0xc] sm:$0xf] %vm790, %v777
        %795 = vst.msk [vmem:[%s356 + $0x10] sm:$0xf] %vm790, %v778
        %796 = vst.msk [vmem:[%s356 + $0x14] sm:$0xf] %vm790, %v779
        %797 = vst.msk [vmem:[%s356 + $0x18] sm:$0xf] %vm790, %v780
        %798 = vst.msk [vmem:[%s356 + $0x1c] sm:$0xf] %vm790, %v781
        %v800 = vsel %vm484, 1031814528, 0
        %802 = vmatprep.subr.bf16.mxu0 0
        %803 = vmatpush1.bf16.xpose.msra.mxu0 %v486
        %804 = vmatprep.subr.bf16.mxu0 0
        %805 = vmatpush1.bf16.xpose.msra.mxu0 %v489
        %806 = vmatprep.subr.bf16.mxu0 0
        %807 = vmatpush1.bf16.xpose.msra.mxu0 0
        %808 = vmatprep.subr.bf16.mxu0 0
        %809 = vmatpush1.bf16.xpose.msra.mxu0 0
        %810 = vmatprep.subr.bf16.mxu0 0
        %811 = vmatpush1.bf16.xpose.msra.mxu0 0
        %812 = vmatprep.subr.bf16.mxu0 0
        %813 = vmatpush1.bf16.xpose.msra.mxu0 0
        %814 = vmatprep.subr.bf16.mxu0 0
        %815 = vmatpush1.bf16.xpose.msra.mxu0 0
        %816 = vmatprep.subr.bf16.mxu0 0
        %817 = vmatpush1.bf16.xpose.msra.mxu0 0
        %818 = vmatprep.subr.bf16.mxu0 0
        %819 = vmatpush1.bf16.xpose.msra.mxu0 0
        %820 = vmatprep.subr.bf16.mxu0 0
        %821 = vmatpush1.bf16.xpose.msra.mxu0 0
        %822 = vmatprep.subr.bf16.mxu0 0
        %823 = vmatpush1.bf16.xpose.msra.mxu0 0
        %824 = vmatprep.subr.bf16.mxu0 0
        %825 = vmatpush1.bf16.xpose.msra.mxu0 0
        %826 = vmatprep.subr.bf16.mxu0 0
        %827 = vmatpush1.bf16.xpose.msra.mxu0 0
        %828 = vmatprep.subr.bf16.mxu0 0
        %829 = vmatpush1.bf16.xpose.msra.mxu0 0
        %830 = vmatprep.subr.bf16.mxu0 0
        %831 = vmatpush1.bf16.xpose.msra.mxu0 0
        %832 = vmatprep.subr.bf16.mxu0 0
        %833 = vmatpush1.bf16.xpose.msra.mxu0 0
        %834 = vmatprep.mubr.bf16.mxu0 0
        %835 = vmatmul.mubr.bf16.gmra.mrb[0].mxu0 %v800
        %v836 = vpop.f32.mrb[0].mxu0
        %v837 = vadd.f32 0.0, %v836
        %v838 = vpop.f32.mrb[0].mxu0
        %v839 = vpop.f32.mrb[0].mxu0
        %v840 = vpop.f32.mrb[0].mxu0
        %841 = vdwg.mxu0
        %v842 = vpack.c.bf16 %v837, %v837
        %v843 = vld [vmem:[%s6] sm:$0xf]
        %v844 = vld [vmem:[%s6 + $0x4] sm:$0xf]
        %v845 = vld [vmem:[%s6 + $0x8] sm:$0xf]
        %v846 = vld [vmem:[%s6 + $0xc] sm:$0xf]
        %v847 = vld [vmem:[%s7] sm:$0x1]
        %v852 = vunpack.c.l.b16 %v843
        %v853 = vunpack.c.l.b16 %v844
        %v854 = vunpack.c.l.b16 %v845
        %v855 = vunpack.c.l.b16 %v846
        %v856 = vpack.c.b16 %v853, %v852
        %v857 = vpack.c.b16 %v855, %v854
        %v859 = vsel %vm618, %v842, 0
        %v862 = vsel %vm618, %v856, 0
        %v865 = vsel %vm618, %v857, 0
        %867 = vmatprep.subr.bf16.mxu0 0
        %868 = vmatpush1.bf16.xpose.msra.mxu0 %v862
        %869 = vmatprep.subr.bf16.mxu0 0
        %870 = vmatpush1.bf16.xpose.msra.mxu0 %v865
        %871 = vmatprep.subr.bf16.mxu0 0
        %872 = vmatpush1.bf16.xpose.msra.mxu0 0
        %873 = vmatprep.subr.bf16.mxu0 0
        %874 = vmatpush1.bf16.xpose.msra.mxu0 0
        %875 = vmatprep.subr.bf16.mxu0 0
        %876 = vmatpush1.bf16.xpose.msra.mxu0 0
        %877 = vmatprep.subr.bf16.mxu0 0
        %878 = vmatpush1.bf16.xpose.msra.mxu0 0
        %879 = vmatprep.subr.bf16.mxu0 0
        %880 = vmatpush1.bf16.xpose.msra.mxu0 0
        %881 = vmatprep.subr.bf16.mxu0 0
        %882 = vmatpush1.bf16.xpose.msra.mxu0 0
        %883 = vmatprep.subr.bf16.mxu0 0
        %884 = vmatpush1.bf16.xpose.msra.mxu0 0
        %885 = vmatprep.subr.bf16.mxu0 0
        %886 = vmatpush1.bf16.xpose.msra.mxu0 0
        %887 = vmatprep.subr.bf16.mxu0 0
        %888 = vmatpush1.bf16.xpose.msra.mxu0 0
        %889 = vmatprep.subr.bf16.mxu0 0
        %890 = vmatpush1.bf16.xpose.msra.mxu0 0
        %891 = vmatprep.subr.bf16.mxu0 0
        %892 = vmatpush1.bf16.xpose.msra.mxu0 0
        %893 = vmatprep.subr.bf16.mxu0 0
        %894 = vmatpush1.bf16.xpose.msra.mxu0 0
        %895 = vmatprep.subr.bf16.mxu0 0
        %896 = vmatpush1.bf16.xpose.msra.mxu0 0
        %897 = vmatprep.subr.bf16.mxu0 0
        %898 = vmatpush1.bf16.xpose.msra.mxu0 0
        %899 = vmatprep.mubr.bf16.mxu0 0
        %900 = vmatmul.mubr.bf16.gmra.mrb[0].mxu0 %v859
        %v901 = vpop.f32.mrb[0].mxu0
        %v902 = vadd.f32 %v847, %v901
        %v903 = vpop.f32.mrb[0].mxu0
        %v904 = vpop.f32.mrb[0].mxu0
        %v905 = vpop.f32.mrb[0].mxu0
        %906 = vdwg.mxu0
        %vm907 = vcmask 253952
        %908 = vst.msk [vmem:[%s362] sm:$0x1] %vm907, %v902
        %s909 = sand.u32 %s230, 1
        %s910 = scalar_lea.sflag [#allocation3], %s909
        %s911 = sand.u32 %s230, 1
        %s912 = smul.addr %s911, 32
        %s913 = scalar_lea.vmem [#allocation2], %s912
        %s914 = sand.u32 %s256, 1
        %s915 = scalar_lea.sflag [#allocation5], %s914
        %s916 = sand.u32 %s256, 1
        %s917 = scalar_lea.vmem [#allocation4], %s916
        // Predicated region
        $region57: #{tpu_custom_call.1} parent=55 // pred_check
          %p918 = pneg %p240
        $region58: #{tpu_custom_call.1} parent=55 // pred_check_branch
          %920 = sbr.rel (%p918) target = $region60
        $region59: #{tpu_custom_call.1} parent=55 // pred_region
          %s922 = ssub.s32 512, 512
          %923 = vsyncadd %s910, %s922
          %s924 = smul.addr %s28, 8
          %s925 = smul.addr %s924, 64
          %s926 = scalar_lea.hbm %s9, %s925
          %s927 = sshll.u32 %s913, 4
          %s928 = int_to_ptr.vmem [resolvable:$true] %s927
          %933 = dma.vmem_to_hbm [thread:$0]  %s928, 512, %s926, %s910, 64, 64, 4
        $region60: #{tpu_custom_call.1} parent=55 // pred_fallthru
          _
        // Predicated region
        $region61: #{tpu_custom_call.1} parent=55 // pred_check
          %p934 = pneg %p266
        $region62: #{tpu_custom_call.1} parent=55 // pred_check_branch
          %936 = sbr.rel (%p934) target = $region64
        $region63: #{tpu_custom_call.1} parent=55 // pred_region
          %s938 = ssub.s32 16, 16
          %939 = vsyncadd %s915, %s938
          %s940 = smul.addr %s28, 16
          %s941 = scalar_lea.hbm %s10, %s940
          %s943 = sshll.u32 %s917, 4
          %s944 = int_to_ptr.vmem [resolvable:$true] %s943
          %946 = dma.vmem_to_hbm [thread:$0]  %s944, 16, %s941, %s915
        $region64: #{tpu_custom_call.1} parent=55 // pred_fallthru
          _
      $region56: #{tpu_custom_call.1} parent=5 // pred_fallthru
        _
      %p947 = scmp.le.s32.totalorder 2, %s23
      // Predicated region
      $region65: #{tpu_custom_call.1} parent=5 // pred_check
        %p948 = pneg %p947
      $region66: #{tpu_custom_call.1} parent=5 // pred_check_branch
        %950 = sbr.rel (%p948) target = $region68
      $region67: #{tpu_custom_call.1} parent=5 // pred_region
        %s951 = ssub.s32 %s23, 2
        // Predicated region
        $region69: #{tpu_custom_call.1} parent=67 // pred_check
          %p952 = pneg %p246
        $region70: #{tpu_custom_call.1} parent=67 // pred_check_branch
          %954 = sbr.rel (%p952) target = $region72
        $region71: #{tpu_custom_call.1} parent=67 // pred_region
          %s955 = sand.u32 %s231, 1
          %s956 = scalar_lea.sflag [#allocation3], %s955
          %s957 = sand.u32 %s231, 1
          %s958 = smul.addr %s957, 32
          %s959 = scalar_lea.vmem [#allocation2], %s958
          %960 = dma.done %s956, 512
        $region72: #{tpu_custom_call.1} parent=67 // pred_fallthru
          _
        // Predicated region
        $region73: #{tpu_custom_call.1} parent=67 // pred_check
          %p961 = pneg %p272
        $region74: #{tpu_custom_call.1} parent=67 // pred_check_branch
          %963 = sbr.rel (%p961) target = $region76
        $region75: #{tpu_custom_call.1} parent=67 // pred_region
          %s964 = sand.u32 %s257, 1
          %s965 = scalar_lea.sflag [#allocation5], %s964
          %s966 = sand.u32 %s257, 1
          %s967 = scalar_lea.vmem [#allocation4], %s966
          %968 = dma.done %s965, 16
        $region76: #{tpu_custom_call.1} parent=67 // pred_fallthru
          _
      $region68: #{tpu_custom_call.1} parent=5 // pred_fallthru
        _
    $region6: #{tpu_custom_call.1} parent=1 // loop_footer
      %s27 = sadd.s32 1, %s23
    $region7: #{tpu_custom_call.1} parent=1 // loop_footer_branch
      %22 = sbr.rel target = $region3
    $region8: #{tpu_custom_call.1} parent=1 // loop_exit
      _
    %969 = vsyncpa [#allocation3], 1
    %s970 = scalar_lea.sflag [#allocation3], 1
    %971 = vsyncpa %s970, 1
    %972 = vsyncpa [#allocation5], 1
    %s973 = scalar_lea.sflag [#allocation5], 1
    %974 = vsyncpa %s973, 1

</llo_original>
